<compile_context>
chip_gen: v5e
topology: v5e:2x2
jax: 0.10.0
libtpu: 0.0.40
codegen_flags: <defaults>
</compile_context>

<pallas_src>
import jax
import jax.numpy as jnp
from jax.experimental import pallas as pl
from jax.experimental.pallas import tpu as pltpu

# ----------------------------- model constants ------------------------------
N_INPUT = 4
N_OUTPUT = 3
N_NODES = 30
N_HIDDEN = 6                 # tanh layers (hidden_layer1..6)
N_LAYERS = N_HIDDEN + 1      # + output_layer

GP = 32                      # activation lanes per batch group (30 real + 2 pad)
FIN_GP = 8                   # input lanes per batch group (4 real + 4 pad)
OUT_GP = 4                   # output lanes per batch group (3 real + 1 pad)
TB_MIN = 128                 # minimum batch-tile rows per grid step

# Matmul precision: DEFAULT = single bf16 MXU pass, f32 accumulate (fast path).
# Use jax.lax.Precision.HIGHEST for strict-f32 PINN residual work.
MATMUL_PRECISION = jax.lax.Precision.DEFAULT


# ------------------------- generation-aware config --------------------------
def _tpu_config():
    """Returns (lane groups G, max batch tile, grid shards across 2 TCs)."""
    kind = ""
    try:
        kind = jax.devices()[0].device_kind.lower()
    except Exception:
        pass
    # 256-wide MXU on v6e / v7x -> pack 8 groups across 256 lanes; else 4/128.
    groups = 8 if ("v6" in kind or "v7" in kind) else 4
    # Chips where a "parallel" grid axis shards across two TensorCores.
    two_cores = ("v7" in kind) or ("v5p" in kind) or ("v4" in kind)
    # Single-TC chips prefer the biggest tile (serial grid); 2-TC chips keep
    # tiles modest so the grid has >= 2 steps.
    tb_max = 1024 if two_cores else 2048
    return groups, tb_max, two_cores


G, TB_MAX, TWO_CORES = _tpu_config()
FPAD = G * GP                # activation tile lane width (128 or 256)
FIN_PAD = G * FIN_GP         # packed-input lane width (32 or 64)
OUT_W = G * OUT_GP           # packed-output lane width (16 or 32)


# --------------------------------- kernel -----------------------------------
def pinn_kernel(x_ref, w0_ref, wh_ref, bh_ref, wo_ref, bo_ref, o_ref):
    """One batch tile of the 7-layer MLP, G batch groups packed across lanes.

    x_ref : (TB, FIN_PAD)        packed inputs (group g in lanes [8g, 8g+4))
    w0_ref: (FIN_PAD, FPAD)      layer-1 slab (rows [8g,8g+8) -> lanes [32g,32g+30))
    wh_ref: (N_HIDDEN-1, FPAD, FPAD)  layers 2..6, block-diagonal per group
    bh_ref: (N_HIDDEN, 1, FPAD)  biases of the 6 tanh layers
    wo_ref: (FPAD, OUT_W)        output layer, compacts group g -> lanes [4g,4g+3)
    bo_ref: (1, OUT_W)           output bias
    o_ref : (TB, OUT_W)
    """
    # Layer 1 (single fused dot) + tanh.  Zero pad lanes stay zero (tanh(0)=0).
    h = jnp.tanh(
        jnp.dot(x_ref[...], w0_ref[...],
                precision=MATMUL_PRECISION,
                preferred_element_type=jnp.float32)
        + bh_ref[0]
    )

    # Layers 2..6: block-diagonal (G x 30x30) weights, tanh activation.
    for i in range(N_HIDDEN - 1):
        h = jnp.tanh(
            jnp.dot(h, wh_ref[i],
                    precision=MATMUL_PRECISION,
                    preferred_element_type=jnp.float32)
            + bh_ref[i + 1]
        )

    # Output layer: compacting block-diagonal (G x 30x3) weights, no activation.
    o_ref[...] = (
        jnp.dot(h, wo_ref[...],
                precision=MATMUL_PRECISION,
                preferred_element_type=jnp.float32)
        + bo_ref[...]
    )


# ------------------------------ tiling policy -------------------------------
def _cdiv(a, b):
    return -(-a // b)


def _round_up(x, m):
    return _cdiv(x, m) * m


def _choose_tb(rows_per_group):
    """Pick (batch-tile rows per grid step, number of grid steps)."""
    steps = _cdiv(rows_per_group, TB_MAX)
    if TWO_CORES and rows_per_group > TB_MIN:
        # Force an even, >=2-step grid so the "parallel" axis feeds both TCs.
        steps = max(steps, 2)
        steps += steps % 2
    # Balance rows across steps to minimize padding (tile is a 128-multiple).
    tb = max(TB_MIN, min(TB_MAX, _round_up(_cdiv(rows_per_group, steps), TB_MIN)))
    steps = _cdiv(rows_per_group, tb)
    if TWO_CORES and steps > 1 and steps % 2:
        steps += 1
    return tb, steps


# ------------------------------- forward pass -------------------------------
@jax.jit
def pinn_forward(x, y, z, t, w0, w_hid, b_hid, w_out, b_out):
    """x, y, z, t: (N, 1) float32. Returns (N, 3) float32."""
    inputs = jnp.concatenate([x, y, z, t], axis=1)            # (N, 4)
    n = inputs.shape[0]

    rows_per_group = _cdiv(n, G)
    tb, steps = _choose_tb(rows_per_group)
    n_per_group = steps * tb
    n_total = G * n_per_group

    # Round-robin lane packing: point p -> row p // G, lanes [8*(p%G), +4).
    # Pad batch to n_total and features 4 -> 8, then a single reshape packs
    # G consecutive points into one 32/64-lane row (no transpose needed).
    xp = jnp.pad(inputs, ((0, n_total - n), (0, FIN_GP - N_INPUT)))
    xp = xp.reshape(n_per_group, FIN_PAD)

    out_packed = pl.pallas_call(
        pinn_kernel,
        out_shape=jax.ShapeDtypeStruct((n_per_group, OUT_W), jnp.float32),
        grid_spec=pltpu.PrefetchScalarGridSpec(
            num_scalar_prefetch=0,
            grid=(steps,),
            in_specs=[
                pl.BlockSpec((tb, FIN_PAD), lambda i: (i, 0)),
                # Weights/biases have constant index maps -> fetched once by
                # the pipeline (no per-step re-DMA needed).
                pl.BlockSpec((FIN_PAD, FPAD), lambda i: (0, 0)),
                pl.BlockSpec((N_HIDDEN - 1, FPAD, FPAD), lambda i: (0, 0, 0)),
                pl.BlockSpec((N_HIDDEN, 1, FPAD), lambda i: (0, 0, 0)),
                pl.BlockSpec((FPAD, OUT_W), lambda i: (0, 0)),
                pl.BlockSpec((1, OUT_W), lambda i: (0, 0)),
            ],
            out_specs=pl.BlockSpec((tb, OUT_W), lambda i: (i, 0)),
        ),
        compiler_params=pltpu.CompilerParams(
            dimension_semantics=("parallel",)
        ),
    )(xp, w0, w_hid, b_hid, w_out, b_out)

    # Row r, lanes [4g, 4g+3) of the packed output = outputs of point r*G + g,
    # so un-packing is a pure reshape, then drop the pad lane and pad rows.
    out = out_packed.reshape(n_total, OUT_GP)
    return out[:n, :N_OUTPUT]


# ------------------------------ parameter init ------------------------------
def init_params(key):
    """Per-layer params matching the PyTorch module: xavier_uniform_ weights
    (stored (in, out), i.e. transposed vs torch's (out, in)) and standard-normal
    biases."""
    dims = [(N_INPUT, N_NODES)] + [(N_NODES, N_NODES)] * 5 + [(N_NODES, N_OUTPUT)]
    ws, bs = [], []
    for fan_in, fan_out in dims:
        key, kw, kb = jax.random.split(key, 3)
        bound = (6.0 / (fan_in + fan_out)) ** 0.5
        ws.append(jax.random.uniform(kw, (fan_in, fan_out), jnp.float32, -bound, bound))
        bs.append(jax.random.normal(kb, (fan_out,), jnp.float32))
    return ws, bs


def pack_params(ws, bs):
    """Pack per-layer params into the G-way lane-packed layout.

    w0   : (FIN_PAD, FPAD)          layer 1; rows [8g,8g+4) -> lanes [32g,32g+30)
    w_hid: (N_HIDDEN-1, FPAD, FPAD) layers 2..6, block-diagonal 30x30 per group
    b_hid: (N_HIDDEN, 1, FPAD)      tanh-layer biases, one 32-lane group each
    w_out: (FPAD, OUT_W)            output layer; lanes [32g,32g+30) -> [4g,4g+3)
    b_out: (1, OUT_W)               output bias
    All off-block entries are zero, so the packing is exact (tanh(0)=0).
    """
    w0 = jnp.zeros((FIN_PAD, FPAD), jnp.float32)
    w_hid = jnp.zeros((N_HIDDEN - 1, FPAD, FPAD), jnp.float32)
    b_hid = jnp.zeros((N_HIDDEN, 1, FPAD), jnp.float32)
    w_out = jnp.zeros((FPAD, OUT_W), jnp.float32)
    b_out = jnp.zeros((1, OUT_W), jnp.float32)

    for g in range(G):
        lo = GP * g
        # Layer 1
        w0 = w0.at[FIN_GP * g:FIN_GP * g + N_INPUT, lo:lo + N_NODES].set(ws[0])
        b_hid = b_hid.at[0, 0, lo:lo + N_NODES].set(bs[0])
        # Layers 2..6
        for i in range(1, N_HIDDEN):
            w_hid = w_hid.at[i - 1, lo:lo + N_NODES, lo:lo + N_NODES].set(ws[i])
            b_hid = b_hid.at[i, 0, lo:lo + N_NODES].set(bs[i])
        # Output layer (compacts lanes)
        oo = OUT_GP * g
        w_out = w_out.at[lo:lo + N_NODES, oo:oo + N_OUTPUT].set(ws[N_HIDDEN])
        b_out = b_out.at[0, oo:oo + N_OUTPUT].set(bs[N_HIDDEN])

    return w0, w_hid, b_hid, w_out, b_out


# -------------------------------- reference ---------------------------------
def reference_forward(x, y, z, t, ws, bs):
    """Pure-JAX reference on the unpacked params (same matmul precision)."""
    h = jnp.concatenate([x, y, z, t], axis=1)
    for i in range(N_LAYERS):
        h = jnp.dot(h, ws[i], precision=MATMUL_PRECISION) + bs[i]
        if i < N_LAYERS - 1:
            h = jnp.tanh(h)
    return h


if __name__ == "__main__":
    key = jax.random.PRNGKey(0)
    kp, kx, ky, kz, kt = jax.random.split(key, 5)

    ws, bs = init_params(kp)
    packed = pack_params(ws, bs)

    n = 256  # number of collocation points
    x = jax.random.normal(kx, (n, 1), jnp.float32)
    y = jax.random.normal(ky, (n, 1), jnp.float32)
    z = jax.random.normal(kz, (n, 1), jnp.float32)
    t = jax.random.normal(kt, (n, 1), jnp.float32)

    out = pinn_forward(x, y, z, t, *packed)
    out = jax.block_until_ready(out)

    ref = reference_forward(x, y, z, t, ws, bs)
    assert out.shape == (n, N_OUTPUT)
    assert jnp.allclose(out, ref, atol=1e-5, rtol=1e-5)

    print("KERNEL_OK")
</pallas_src>

<mosaic_0001>
module attributes {stable_mosaic.version = 11 : i64} {
  func.func @pinn_kernel(%arg0: i32, %arg1: memref<128x32xf32, #tpu.memory_space<vmem>>, %arg2: memref<32x128xf32, #tpu.memory_space<vmem>>, %arg3: memref<5x128x128xf32, #tpu.memory_space<vmem>>, %arg4: memref<6x1x128xf32, #tpu.memory_space<vmem>>, %arg5: memref<128x16xf32, #tpu.memory_space<vmem>>, %arg6: memref<1x16xf32, #tpu.memory_space<vmem>>, %arg7: memref<128x16xf32, #tpu.memory_space<vmem>>) attributes {dimension_semantics = [#tpu.dimension_semantics<parallel>], iteration_bounds = array<i64: 1>, scalar_prefetch = 0 : i64, scratch_operands = 0 : i64, tpu.core_type = #tpu.core_type<tc>, window_params = [{transform_indices = @transform_0, window_bounds = array<i64: 128, 32>}, {pipeline_mode = #tpu.pipeline_mode<synchronous>, transform_indices = @transform_1, window_bounds = array<i64: 32, 128>}, {pipeline_mode = #tpu.pipeline_mode<synchronous>, transform_indices = @transform_2, window_bounds = array<i64: 5, 128, 128>}, {pipeline_mode = #tpu.pipeline_mode<synchronous>, transform_indices = @transform_3, window_bounds = array<i64: 6, 1, 128>}, {pipeline_mode = #tpu.pipeline_mode<synchronous>, transform_indices = @transform_4, window_bounds = array<i64: 128, 16>}, {pipeline_mode = #tpu.pipeline_mode<synchronous>, transform_indices = @transform_5, window_bounds = array<i64: 1, 16>}, {transform_indices = @transform_6, window_bounds = array<i64: 128, 16>}]} {
    %c0 = arith.constant 0 : index
    %c0_0 = arith.constant 0 : index
    %0 = vector.load %arg1[%c0, %c0_0] : memref<128x32xf32, #tpu.memory_space<vmem>>, vector<128x32xf32>
    %c0_1 = arith.constant 0 : index
    %c0_2 = arith.constant 0 : index
    %1 = vector.load %arg2[%c0_1, %c0_2] : memref<32x128xf32, #tpu.memory_space<vmem>>, vector<32x128xf32>
    %cst = arith.constant dense<0.000000e+00> : vector<128x128xf32>
    %2 = tpu.matmul %0, %1, %cst {dimension_numbers = #tpu.dot_dimension_numbers<[1], [0], [0], [1], [0, 0, 1, 1], [], []>} : vector<128x32xf32>, vector<32x128xf32>, vector<128x128xf32> -> vector<128x128xf32>
    %c0_3 = arith.constant 0 : index
    %c0_4 = arith.constant 0 : index
    %c0_5 = arith.constant 0 : index
    %3 = vector.load %arg4[%c0_3, %c0_4, %c0_5] : memref<6x1x128xf32, #tpu.memory_space<vmem>>, vector<1x1x128xf32>
    %4 = vector.shape_cast %3 : vector<1x1x128xf32> to vector<1x128xf32>
    %5 = vector.broadcast %4 : vector<1x128xf32> to vector<128x128xf32>
    %6 = arith.addf %2, %5 : vector<128x128xf32>
    %7 = math.tanh %6 : vector<128x128xf32>
    %c0_6 = arith.constant 0 : index
    %c0_7 = arith.constant 0 : index
    %c0_8 = arith.constant 0 : index
    %8 = vector.load %arg3[%c0_6, %c0_7, %c0_8] : memref<5x128x128xf32, #tpu.memory_space<vmem>>, vector<1x128x128xf32>
    %9 = vector.shape_cast %8 : vector<1x128x128xf32> to vector<128x128xf32>
    %cst_9 = arith.constant dense<0.000000e+00> : vector<128x128xf32>
    %10 = tpu.matmul %7, %9, %cst_9 {dimension_numbers = #tpu.dot_dimension_numbers<[1], [0], [0], [1], [0, 0, 1, 1], [], []>} : vector<128x128xf32>, vector<128x128xf32>, vector<128x128xf32> -> vector<128x128xf32>
    %c1 = arith.constant 1 : index
    %c0_10 = arith.constant 0 : index
    %c0_11 = arith.constant 0 : index
    %11 = vector.load %arg4[%c1, %c0_10, %c0_11] : memref<6x1x128xf32, #tpu.memory_space<vmem>>, vector<1x1x128xf32>
    %12 = vector.shape_cast %11 : vector<1x1x128xf32> to vector<1x128xf32>
    %13 = vector.broadcast %12 : vector<1x128xf32> to vector<128x128xf32>
    %14 = arith.addf %10, %13 : vector<128x128xf32>
    %15 = math.tanh %14 : vector<128x128xf32>
    %c1_12 = arith.constant 1 : index
    %c0_13 = arith.constant 0 : index
    %c0_14 = arith.constant 0 : index
    %16 = vector.load %arg3[%c1_12, %c0_13, %c0_14] : memref<5x128x128xf32, #tpu.memory_space<vmem>>, vector<1x128x128xf32>
    %17 = vector.shape_cast %16 : vector<1x128x128xf32> to vector<128x128xf32>
    %cst_15 = arith.constant dense<0.000000e+00> : vector<128x128xf32>
    %18 = tpu.matmul %15, %17, %cst_15 {dimension_numbers = #tpu.dot_dimension_numbers<[1], [0], [0], [1], [0, 0, 1, 1], [], []>} : vector<128x128xf32>, vector<128x128xf32>, vector<128x128xf32> -> vector<128x128xf32>
    %c2 = arith.constant 2 : index
    %c0_16 = arith.constant 0 : index
    %c0_17 = arith.constant 0 : index
    %19 = vector.load %arg4[%c2, %c0_16, %c0_17] : memref<6x1x128xf32, #tpu.memory_space<vmem>>, vector<1x1x128xf32>
    %20 = vector.shape_cast %19 : vector<1x1x128xf32> to vector<1x128xf32>
    %21 = vector.broadcast %20 : vector<1x128xf32> to vector<128x128xf32>
    %22 = arith.addf %18, %21 : vector<128x128xf32>
    %23 = math.tanh %22 : vector<128x128xf32>
    %c2_18 = arith.constant 2 : index
    %c0_19 = arith.constant 0 : index
    %c0_20 = arith.constant 0 : index
    %24 = vector.load %arg3[%c2_18, %c0_19, %c0_20] : memref<5x128x128xf32, #tpu.memory_space<vmem>>, vector<1x128x128xf32>
    %25 = vector.shape_cast %24 : vector<1x128x128xf32> to vector<128x128xf32>
    %cst_21 = arith.constant dense<0.000000e+00> : vector<128x128xf32>
    %26 = tpu.matmul %23, %25, %cst_21 {dimension_numbers = #tpu.dot_dimension_numbers<[1], [0], [0], [1], [0, 0, 1, 1], [], []>} : vector<128x128xf32>, vector<128x128xf32>, vector<128x128xf32> -> vector<128x128xf32>
    %c3 = arith.constant 3 : index
    %c0_22 = arith.constant 0 : index
    %c0_23 = arith.constant 0 : index
    %27 = vector.load %arg4[%c3, %c0_22, %c0_23] : memref<6x1x128xf32, #tpu.memory_space<vmem>>, vector<1x1x128xf32>
    %28 = vector.shape_cast %27 : vector<1x1x128xf32> to vector<1x128xf32>
    %29 = vector.broadcast %28 : vector<1x128xf32> to vector<128x128xf32>
    %30 = arith.addf %26, %29 : vector<128x128xf32>
    %31 = math.tanh %30 : vector<128x128xf32>
    %c3_24 = arith.constant 3 : index
    %c0_25 = arith.constant 0 : index
    %c0_26 = arith.constant 0 : index
    %32 = vector.load %arg3[%c3_24, %c0_25, %c0_26] : memref<5x128x128xf32, #tpu.memory_space<vmem>>, vector<1x128x128xf32>
    %33 = vector.shape_cast %32 : vector<1x128x128xf32> to vector<128x128xf32>
    %cst_27 = arith.constant dense<0.000000e+00> : vector<128x128xf32>
    %34 = tpu.matmul %31, %33, %cst_27 {dimension_numbers = #tpu.dot_dimension_numbers<[1], [0], [0], [1], [0, 0, 1, 1], [], []>} : vector<128x128xf32>, vector<128x128xf32>, vector<128x128xf32> -> vector<128x128xf32>
    %c4 = arith.constant 4 : index
    %c0_28 = arith.constant 0 : index
    %c0_29 = arith.constant 0 : index
    %35 = vector.load %arg4[%c4, %c0_28, %c0_29] : memref<6x1x128xf32, #tpu.memory_space<vmem>>, vector<1x1x128xf32>
    %36 = vector.shape_cast %35 : vector<1x1x128xf32> to vector<1x128xf32>
    %37 = vector.broadcast %36 : vector<1x128xf32> to vector<128x128xf32>
    %38 = arith.addf %34, %37 : vector<128x128xf32>
    %39 = math.tanh %38 : vector<128x128xf32>
    %c4_30 = arith.constant 4 : index
    %c0_31 = arith.constant 0 : index
    %c0_32 = arith.constant 0 : index
    %40 = vector.load %arg3[%c4_30, %c0_31, %c0_32] : memref<5x128x128xf32, #tpu.memory_space<vmem>>, vector<1x128x128xf32>
    %41 = vector.shape_cast %40 : vector<1x128x128xf32> to vector<128x128xf32>
    %cst_33 = arith.constant dense<0.000000e+00> : vector<128x128xf32>
    %42 = tpu.matmul %39, %41, %cst_33 {dimension_numbers = #tpu.dot_dimension_numbers<[1], [0], [0], [1], [0, 0, 1, 1], [], []>} : vector<128x128xf32>, vector<128x128xf32>, vector<128x128xf32> -> vector<128x128xf32>
    %c5 = arith.constant 5 : index
    %c0_34 = arith.constant 0 : index
    %c0_35 = arith.constant 0 : index
    %43 = vector.load %arg4[%c5, %c0_34, %c0_35] : memref<6x1x128xf32, #tpu.memory_space<vmem>>, vector<1x1x128xf32>
    %44 = vector.shape_cast %43 : vector<1x1x128xf32> to vector<1x128xf32>
    %45 = vector.broadcast %44 : vector<1x128xf32> to vector<128x128xf32>
    %46 = arith.addf %42, %45 : vector<128x128xf32>
    %47 = math.tanh %46 : vector<128x128xf32>
    %c0_36 = arith.constant 0 : index
    %c0_37 = arith.constant 0 : index
    %48 = vector.load %arg5[%c0_36, %c0_37] : memref<128x16xf32, #tpu.memory_space<vmem>>, vector<128x16xf32>
    %cst_38 = arith.constant dense<0.000000e+00> : vector<128x16xf32>
    %49 = tpu.matmul %47, %48, %cst_38 {dimension_numbers = #tpu.dot_dimension_numbers<[1], [0], [0], [1], [0, 0, 1, 1], [], []>} : vector<128x128xf32>, vector<128x16xf32>, vector<128x16xf32> -> vector<128x16xf32>
    %c0_39 = arith.constant 0 : index
    %c0_40 = arith.constant 0 : index
    %50 = vector.load %arg6[%c0_39, %c0_40] : memref<1x16xf32, #tpu.memory_space<vmem>>, vector<1x16xf32>
    %51 = vector.broadcast %50 : vector<1x16xf32> to vector<128x16xf32>
    %52 = arith.addf %49, %51 : vector<128x16xf32>
    %c0_41 = arith.constant 0 : index
    %c0_42 = arith.constant 0 : index
    %53 = vector.load %arg7[%c0_41, %c0_42] : memref<128x16xf32, #tpu.memory_space<vmem>>, vector<128x16xf32>
    tpu.vector_store %arg7[%c0_41, %c0_42], %52 {strides = array<i32>} : memref<128x16xf32, #tpu.memory_space<vmem>>, vector<128x16xf32>,
    return
  }
  func.func @transform_0(%arg0: i32) -> (i32, i32) {
    %c0_i32 = arith.constant 0 : i32
    %c0_i32_0 = arith.constant 0 : i32
    return %arg0, %c0_i32 : i32, i32
  }
  func.func @transform_1(%arg0: i32) -> (i32, i32) {
    %c0_i32 = arith.constant 0 : i32
    %c0_i32_0 = arith.constant 0 : i32
    %c0_i32_1 = arith.constant 0 : i32
    return %c0_i32, %c0_i32_0 : i32, i32
  }
  func.func @transform_2(%arg0: i32) -> (i32, i32, i32) {
    %c0_i32 = arith.constant 0 : i32
    %c0_i32_0 = arith.constant 0 : i32
    %c0_i32_1 = arith.constant 0 : i32
    %c0_i32_2 = arith.constant 0 : i32
    return %c0_i32, %c0_i32_0, %c0_i32_1 : i32, i32, i32
  }
  func.func @transform_3(%arg0: i32) -> (i32, i32, i32) {
    %c0_i32 = arith.constant 0 : i32
    %c0_i32_0 = arith.constant 0 : i32
    %c0_i32_1 = arith.constant 0 : i32
    %c0_i32_2 = arith.constant 0 : i32
    return %c0_i32, %c0_i32_0, %c0_i32_1 : i32, i32, i32
  }
  func.func @transform_4(%arg0: i32) -> (i32, i32) {
    %c0_i32 = arith.constant 0 : i32
    %c0_i32_0 = arith.constant 0 : i32
    %c0_i32_1 = arith.constant 0 : i32
    return %c0_i32, %c0_i32_0 : i32, i32
  }
  func.func @transform_5(%arg0: i32) -> (i32, i32) {
    %c0_i32 = arith.constant 0 : i32
    %c0_i32_0 = arith.constant 0 : i32
    %c0_i32_1 = arith.constant 0 : i32
    return %c0_i32, %c0_i32_0 : i32, i32
  }
  func.func @transform_6(%arg0: i32) -> (i32, i32) {
    %c0_i32 = arith.constant 0 : i32
    %c0_i32_0 = arith.constant 0 : i32
    return %arg0, %c0_i32 : i32, i32
  }
}

</mosaic_0001>

<llo_original>
// kernel: pinn_forward.1
$region0: #{pinn_forward.1}
  #allocation0 [shape = 'u32[]', space=smem, size = 0x4, offset = 0x4, fixed_abs, tag = 'smem constant byte address 0x4 - core index']
  #allocation1 [shape = 'u32[72,128]{1,0:T(1,128)}', space=vmem, size = 0x9000, scoped, tag = 'internal scratch']
  %s0 = inlined_call_operand.vmem [shape: f32[128,32], index: 0, kind: input, shape index: {}]
  %s1 = inlined_call_operand.vmem [shape: f32[32,128], index: 1, kind: input, shape index: {}]
  %s2 = inlined_call_operand.vmem [shape: f32[5,128,128], index: 2, kind: input, shape index: {}]
  %s3 = inlined_call_operand.vmem [shape: f32[6,1,128], index: 3, kind: input, shape index: {}]
  %s4 = inlined_call_operand.vmem [shape: f32[128,16], index: 4, kind: input, shape index: {}]
  %s5 = inlined_call_operand.vmem [shape: f32[1,16], index: 5, kind: input, shape index: {}]
  %s6 = inlined_call_operand.vmem [shape: f32[128,16], index: 6, kind: output, shape index: {}]
  %s7 = sld [smem:[#allocation0]]
  $region34: #{pinn_forward.1} parent=0
    _
  %s9 = ssub.s32 1, %s7
  %s10 = scalar_select 0, %s9, %s7
  // Predicated region
  $region2: #{pinn_forward.1} parent=0 // pred_check
    _
  $region3: #{pinn_forward.1} parent=0 // pred_check_branch
    %12 = sbr.rel (0) target = $region5
  $region4: #{pinn_forward.1} parent=0 // pred_region
    _
  $region5: #{pinn_forward.1} parent=0 // pred_fallthru
    _
  // Predicated region
  $region6: #{pinn_forward.1} parent=0 // pred_check
    _
  $region7: #{pinn_forward.1} parent=0 // pred_check_branch
    %14 = sbr.rel (0) target = $region9
  $region8: #{pinn_forward.1} parent=0 // pred_region
    _
  $region9: #{pinn_forward.1} parent=0 // pred_fallthru
    _
  // Predicated region
  $region10: #{pinn_forward.1} parent=0 // pred_check
    _
  $region11: #{pinn_forward.1} parent=0 // pred_check_branch
    %16 = sbr.rel (0) target = $region13
  $region12: #{pinn_forward.1} parent=0 // pred_region
    _
  $region13: #{pinn_forward.1} parent=0 // pred_fallthru
    _
  // Predicated region
  $region14: #{pinn_forward.1} parent=0 // pred_check
    _
  $region15: #{pinn_forward.1} parent=0 // pred_check_branch
    %18 = sbr.rel (0) target = $region17
  $region16: #{pinn_forward.1} parent=0 // pred_region
    _
  $region17: #{pinn_forward.1} parent=0 // pred_fallthru
    _
  // Predicated region
  $region18: #{pinn_forward.1} parent=0 // pred_check
    _
  $region19: #{pinn_forward.1} parent=0 // pred_check_branch
    %20 = sbr.rel (0) target = $region21
  $region20: #{pinn_forward.1} parent=0 // pred_region
    _
  $region21: #{pinn_forward.1} parent=0 // pred_fallthru
    _
  // Predicated region
  $region22: #{pinn_forward.1} parent=0 // pred_check
    _
  $region23: #{pinn_forward.1} parent=0 // pred_check_branch
    %22 = sbr.rel (0) target = $region25
  $region24: #{pinn_forward.1} parent=0 // pred_region
    _
  $region25: #{pinn_forward.1} parent=0 // pred_fallthru
    _
  %v23 = vld [vmem:[%s0] sm:$0xff]
  %v24 = vld [vmem:[%s0 + $0x8] sm:$0xff]
  %v25 = vld [vmem:[%s0 + $0x10] sm:$0xff]
  %v26 = vld [vmem:[%s0 + $0x18] sm:$0xff]
  %v27 = vld [vmem:[%s0 + $0x20] sm:$0xff]
  %v28 = vld [vmem:[%s0 + $0x28] sm:$0xff]
  %v29 = vld [vmem:[%s0 + $0x30] sm:$0xff]
  %v30 = vld [vmem:[%s0 + $0x38] sm:$0xff]
  %v31 = vld [vmem:[%s0 + $0x40] sm:$0xff]
  %v32 = vld [vmem:[%s0 + $0x48] sm:$0xff]
  %v33 = vld [vmem:[%s0 + $0x50] sm:$0xff]
  %v34 = vld [vmem:[%s0 + $0x58] sm:$0xff]
  %v35 = vld [vmem:[%s0 + $0x60] sm:$0xff]
  %v36 = vld [vmem:[%s0 + $0x68] sm:$0xff]
  %v37 = vld [vmem:[%s0 + $0x70] sm:$0xff]
  %v38 = vld [vmem:[%s0 + $0x78] sm:$0xff]
  %v39 = vld [vmem:[%s1] sm:$0xff]
  %v40 = vld [vmem:[%s1 + $0x8] sm:$0xff]
  %v41 = vld [vmem:[%s1 + $0x10] sm:$0xff]
  %v42 = vld [vmem:[%s1 + $0x18] sm:$0xff]
  %v43 = vld [vmem:[%s3] sm:$0x1]
  %v45 = vperm.slane %v43, 0
  %vm47 = vcmask 261120
  %v49 = vsel %vm47, %v23, 0
  %v52 = vsel %vm47, %v24, 0
  %v55 = vsel %vm47, %v25, 0
  %v58 = vsel %vm47, %v26, 0
  %v61 = vsel %vm47, %v27, 0
  %v64 = vsel %vm47, %v28, 0
  %v67 = vsel %vm47, %v29, 0
  %v70 = vsel %vm47, %v30, 0
  %v73 = vsel %vm47, %v31, 0
  %v76 = vsel %vm47, %v32, 0
  %v79 = vsel %vm47, %v33, 0
  %v82 = vsel %vm47, %v34, 0
  %v85 = vsel %vm47, %v35, 0
  %v88 = vsel %vm47, %v36, 0
  %v91 = vsel %vm47, %v37, 0
  %v94 = vsel %vm47, %v38, 0
  %96 = vmatpush.msra.mxu0 0.0
  %97 = vmatpush.msra.mxu0 0.0
  %98 = vmatpush.msra.mxu0 0.0
  %99 = vmatpush.msra.mxu0 0.0
  %100 = vmatpush.msra.mxu0 0.0
  %101 = vmatpush.msra.mxu0 0.0
  %102 = vmatpush.msra.mxu0 0.0
  %103 = vmatpush.msra.mxu0 0.0
  %104 = vmatpush.msra.mxu0 0.0
  %105 = vmatpush.msra.mxu0 0.0
  %106 = vmatpush.msra.mxu0 0.0
  %107 = vmatpush.msra.mxu0 0.0
  %108 = vmatpush.msra.mxu0 %v42
  %109 = vmatpush.msra.mxu0 %v41
  %110 = vmatpush.msra.mxu0 %v40
  %111 = vmatpush.msra.mxu0 %v39
  %112 = vmatmul.f32.gmra.mxu0 %v49
  %v113 = vpop.f32.mrf.mxu0
  %v114 = vadd.f32 %v45, %v113
  %115 = vmatmul.f32.gmra.mxu0 %v52
  %v116 = vpop.f32.mrf.mxu0
  %v117 = vadd.f32 %v45, %v116
  %118 = vmatmul.f32.gmra.mxu0 %v55
  %v119 = vpop.f32.mrf.mxu0
  %v120 = vadd.f32 %v45, %v119
  %121 = vmatmul.f32.gmra.mxu0 %v58
  %v122 = vpop.f32.mrf.mxu0
  %v123 = vadd.f32 %v45, %v122
  %124 = vmatmul.f32.gmra.mxu0 %v61
  %v125 = vpop.f32.mrf.mxu0
  %v126 = vadd.f32 %v45, %v125
  %127 = vmatmul.f32.gmra.mxu0 %v64
  %v128 = vpop.f32.mrf.mxu0
  %v129 = vadd.f32 %v45, %v128
  %130 = vmatmul.f32.gmra.mxu0 %v67
  %v131 = vpop.f32.mrf.mxu0
  %v132 = vadd.f32 %v45, %v131
  %133 = vmatmul.f32.gmra.mxu0 %v70
  %v134 = vpop.f32.mrf.mxu0
  %v135 = vadd.f32 %v45, %v134
  %136 = vmatmul.f32.gmra.mxu0 %v73
  %v137 = vpop.f32.mrf.mxu0
  %v138 = vadd.f32 %v45, %v137
  %139 = vmatmul.f32.gmra.mxu0 %v76
  %v140 = vpop.f32.mrf.mxu0
  %v141 = vadd.f32 %v45, %v140
  %142 = vmatmul.f32.gmra.mxu0 %v79
  %v143 = vpop.f32.mrf.mxu0
  %v144 = vadd.f32 %v45, %v143
  %145 = vmatmul.f32.gmra.mxu0 %v82
  %v146 = vpop.f32.mrf.mxu0
  %v147 = vadd.f32 %v45, %v146
  %148 = vmatmul.f32.gmra.mxu0 %v85
  %v149 = vpop.f32.mrf.mxu0
  %v150 = vadd.f32 %v45, %v149
  %151 = vmatmul.f32.gmra.mxu0 %v88
  %v152 = vpop.f32.mrf.mxu0
  %v153 = vadd.f32 %v45, %v152
  %154 = vmatmul.f32.gmra.mxu0 %v91
  %v155 = vpop.f32.mrf.mxu0
  %v156 = vadd.f32 %v45, %v155
  %157 = vmatmul.f32.gmra.mxu0 %v94
  %v158 = vpop.f32.mrf.mxu0
  %v159 = vadd.f32 %v45, %v158
  %160 = vdwg.mxu0
  %v161 = vtanh.pop %v114
  %v162 = vtanh.pop %v117
  %v163 = vtanh.pop %v120
  %v164 = vtanh.pop %v123
  %v165 = vtanh.pop %v126
  %v166 = vtanh.pop %v129
  %v167 = vtanh.pop %v132
  %v168 = vtanh.pop %v135
  %v169 = vtanh.pop %v138
  %v170 = vtanh.pop %v141
  %v171 = vtanh.pop %v144
  %v172 = vtanh.pop %v147
  %v173 = vtanh.pop %v150
  %v174 = vtanh.pop %v153
  %v175 = vtanh.pop %v156
  %v176 = vtanh.pop %v159
  %v177 = vld [vmem:[%s2] sm:$0xff]
  %v178 = vld [vmem:[%s2 + $0x8] sm:$0xff]
  %v179 = vld [vmem:[%s2 + $0x10] sm:$0xff]
  %v180 = vld [vmem:[%s2 + $0x18] sm:$0xff]
  %v181 = vld [vmem:[%s2 + $0x20] sm:$0xff]
  %v182 = vld [vmem:[%s2 + $0x28] sm:$0xff]
  %v183 = vld [vmem:[%s2 + $0x30] sm:$0xff]
  %v184 = vld [vmem:[%s2 + $0x38] sm:$0xff]
  %v185 = vld [vmem:[%s2 + $0x40] sm:$0xff]
  %v186 = vld [vmem:[%s2 + $0x48] sm:$0xff]
  %v187 = vld [vmem:[%s2 + $0x50] sm:$0xff]
  %v188 = vld [vmem:[%s2 + $0x58] sm:$0xff]
  %v189 = vld [vmem:[%s2 + $0x60] sm:$0xff]
  %v190 = vld [vmem:[%s2 + $0x68] sm:$0xff]
  %v191 = vld [vmem:[%s2 + $0x70] sm:$0xff]
  %v192 = vld [vmem:[%s2 + $0x78] sm:$0xff]
  %s193 = scalar_lea.vmem %s3, 1
  %v194 = vld [vmem:[%s193] sm:$0x1]
  %v196 = vperm.slane %v194, 0
  %198 = vmatpush.msra.mxu0 %v192
  %199 = vmatpush.msra.mxu0 %v191
  %200 = vmatpush.msra.mxu0 %v190
  %201 = vmatpush.msra.mxu0 %v189
  %202 = vmatpush.msra.mxu0 %v188
  %203 = vmatpush.msra.mxu0 %v187
  %204 = vmatpush.msra.mxu0 %v186
  %205 = vmatpush.msra.mxu0 %v185
  %206 = vmatpush.msra.mxu0 %v184
  %207 = vmatpush.msra.mxu0 %v183
  %208 = vmatpush.msra.mxu0 %v182
  %209 = vmatpush.msra.mxu0 %v181
  %210 = vmatpush.msra.mxu0 %v180
  %211 = vmatpush.msra.mxu0 %v179
  %212 = vmatpush.msra.mxu0 %v178
  %213 = vmatpush.msra.mxu0 %v177
  %214 = vmatmul.f32.gmra.mxu0 %v161
  %v215 = vpop.f32.mrf.mxu0
  %v216 = vadd.f32 %v196, %v215
  %217 = vmatmul.f32.gmra.mxu0 %v162
  %v218 = vpop.f32.mrf.mxu0
  %v219 = vadd.f32 %v196, %v218
  %220 = vmatmul.f32.gmra.mxu0 %v163
  %v221 = vpop.f32.mrf.mxu0
  %v222 = vadd.f32 %v196, %v221
  %223 = vmatmul.f32.gmra.mxu0 %v164
  %v224 = vpop.f32.mrf.mxu0
  %v225 = vadd.f32 %v196, %v224
  %226 = vmatmul.f32.gmra.mxu0 %v165
  %v227 = vpop.f32.mrf.mxu0
  %v228 = vadd.f32 %v196, %v227
  %229 = vmatmul.f32.gmra.mxu0 %v166
  %v230 = vpop.f32.mrf.mxu0
  %v231 = vadd.f32 %v196, %v230
  %232 = vmatmul.f32.gmra.mxu0 %v167
  %v233 = vpop.f32.mrf.mxu0
  %v234 = vadd.f32 %v196, %v233
  %235 = vmatmul.f32.gmra.mxu0 %v168
  %v236 = vpop.f32.mrf.mxu0
  %v237 = vadd.f32 %v196, %v236
  %238 = vmatmul.f32.gmra.mxu0 %v169
  %v239 = vpop.f32.mrf.mxu0
  %v240 = vadd.f32 %v196, %v239
  %241 = vmatmul.f32.gmra.mxu0 %v170
  %v242 = vpop.f32.mrf.mxu0
  %v243 = vadd.f32 %v196, %v242
  %244 = vmatmul.f32.gmra.mxu0 %v171
  %v245 = vpop.f32.mrf.mxu0
  %v246 = vadd.f32 %v196, %v245
  %247 = vmatmul.f32.gmra.mxu0 %v172
  %v248 = vpop.f32.mrf.mxu0
  %v249 = vadd.f32 %v196, %v248
  %250 = vmatmul.f32.gmra.mxu0 %v173
  %v251 = vpop.f32.mrf.mxu0
  %v252 = vadd.f32 %v196, %v251
  %253 = vmatmul.f32.gmra.mxu0 %v174
  %v254 = vpop.f32.mrf.mxu0
  %v255 = vadd.f32 %v196, %v254
  %256 = vmatmul.f32.gmra.mxu0 %v175
  %v257 = vpop.f32.mrf.mxu0
  %v258 = vadd.f32 %v196, %v257
  %259 = vmatmul.f32.gmra.mxu0 %v176
  %v260 = vpop.f32.mrf.mxu0
  %v261 = vadd.f32 %v196, %v260
  %262 = vdwg.mxu0
  %v263 = vtanh.pop %v216
  %v264 = vtanh.pop %v219
  %v265 = vtanh.pop %v222
  %v266 = vtanh.pop %v225
  %v267 = vtanh.pop %v228
  %v268 = vtanh.pop %v231
  %v269 = vtanh.pop %v234
  %v270 = vtanh.pop %v237
  %v271 = vtanh.pop %v240
  %v272 = vtanh.pop %v243
  %v273 = vtanh.pop %v246
  %v274 = vtanh.pop %v249
  %v275 = vtanh.pop %v252
  %v276 = vtanh.pop %v255
  %v277 = vtanh.pop %v258
  %v278 = vtanh.pop %v261
  %s279 = scalar_lea.vmem %s2, 128
  %v280 = vld [vmem:[%s279] sm:$0xff]
  %v281 = vld [vmem:[%s279 + $0x8] sm:$0xff]
  %v282 = vld [vmem:[%s279 + $0x10] sm:$0xff]
  %v283 = vld [vmem:[%s279 + $0x18] sm:$0xff]
  %v284 = vld [vmem:[%s279 + $0x20] sm:$0xff]
  %v285 = vld [vmem:[%s279 + $0x28] sm:$0xff]
  %v286 = vld [vmem:[%s279 + $0x30] sm:$0xff]
  %v287 = vld [vmem:[%s279 + $0x38] sm:$0xff]
  %v288 = vld [vmem:[%s279 + $0x40] sm:$0xff]
  %v289 = vld [vmem:[%s279 + $0x48] sm:$0xff]
  %v290 = vld [vmem:[%s279 + $0x50] sm:$0xff]
  %v291 = vld [vmem:[%s279 + $0x58] sm:$0xff]
  %v292 = vld [vmem:[%s279 + $0x60] sm:$0xff]
  %v293 = vld [vmem:[%s279 + $0x68] sm:$0xff]
  %v294 = vld [vmem:[%s279 + $0x70] sm:$0xff]
  %v295 = vld [vmem:[%s279 + $0x78] sm:$0xff]
  %s296 = scalar_lea.vmem %s3, 2
  %v297 = vld [vmem:[%s296] sm:$0x1]
  %v299 = vperm.slane %v297, 0
  %301 = vmatpush.msra.mxu0 %v295
  %302 = vmatpush.msra.mxu0 %v294
  %303 = vmatpush.msra.mxu0 %v293
  %304 = vmatpush.msra.mxu0 %v292
  %305 = vmatpush.msra.mxu0 %v291
  %306 = vmatpush.msra.mxu0 %v290
  %307 = vmatpush.msra.mxu0 %v289
  %308 = vmatpush.msra.mxu0 %v288
  %309 = vmatpush.msra.mxu0 %v287
  %310 = vmatpush.msra.mxu0 %v286
  %311 = vmatpush.msra.mxu0 %v285
  %312 = vmatpush.msra.mxu0 %v284
  %313 = vmatpush.msra.mxu0 %v283
  %314 = vmatpush.msra.mxu0 %v282
  %315 = vmatpush.msra.mxu0 %v281
  %316 = vmatpush.msra.mxu0 %v280
  %317 = vmatmul.f32.gmra.mxu0 %v263
  %v318 = vpop.f32.mrf.mxu0
  %v319 = vadd.f32 %v299, %v318
  %320 = vmatmul.f32.gmra.mxu0 %v264
  %v321 = vpop.f32.mrf.mxu0
  %v322 = vadd.f32 %v299, %v321
  %323 = vmatmul.f32.gmra.mxu0 %v265
  %v324 = vpop.f32.mrf.mxu0
  %v325 = vadd.f32 %v299, %v324
  %326 = vmatmul.f32.gmra.mxu0 %v266
  %v327 = vpop.f32.mrf.mxu0
  %v328 = vadd.f32 %v299, %v327
  %329 = vmatmul.f32.gmra.mxu0 %v267
  %v330 = vpop.f32.mrf.mxu0
  %v331 = vadd.f32 %v299, %v330
  %332 = vmatmul.f32.gmra.mxu0 %v268
  %v333 = vpop.f32.mrf.mxu0
  %v334 = vadd.f32 %v299, %v333
  %335 = vmatmul.f32.gmra.mxu0 %v269
  %v336 = vpop.f32.mrf.mxu0
  %v337 = vadd.f32 %v299, %v336
  %338 = vmatmul.f32.gmra.mxu0 %v270
  %v339 = vpop.f32.mrf.mxu0
  %v340 = vadd.f32 %v299, %v339
  %341 = vmatmul.f32.gmra.mxu0 %v271
  %v342 = vpop.f32.mrf.mxu0
  %v343 = vadd.f32 %v299, %v342
  %344 = vmatmul.f32.gmra.mxu0 %v272
  %v345 = vpop.f32.mrf.mxu0
  %v346 = vadd.f32 %v299, %v345
  %347 = vmatmul.f32.gmra.mxu0 %v273
  %v348 = vpop.f32.mrf.mxu0
  %v349 = vadd.f32 %v299, %v348
  %350 = vmatmul.f32.gmra.mxu0 %v274
  %v351 = vpop.f32.mrf.mxu0
  %v352 = vadd.f32 %v299, %v351
  %353 = vmatmul.f32.gmra.mxu0 %v275
  %v354 = vpop.f32.mrf.mxu0
  %v355 = vadd.f32 %v299, %v354
  %356 = vmatmul.f32.gmra.mxu0 %v276
  %v357 = vpop.f32.mrf.mxu0
  %v358 = vadd.f32 %v299, %v357
  %359 = vmatmul.f32.gmra.mxu0 %v277
  %v360 = vpop.f32.mrf.mxu0
  %v361 = vadd.f32 %v299, %v360
  %362 = vmatmul.f32.gmra.mxu0 %v278
  %v363 = vpop.f32.mrf.mxu0
  %v364 = vadd.f32 %v299, %v363
  %365 = vdwg.mxu0
  %v366 = vtanh.pop %v319
  %v367 = vtanh.pop %v322
  %v368 = vtanh.pop %v325
  %v369 = vtanh.pop %v328
  %v370 = vtanh.pop %v331
  %v371 = vtanh.pop %v334
  %v372 = vtanh.pop %v337
  %v373 = vtanh.pop %v340
  %v374 = vtanh.pop %v343
  %v375 = vtanh.pop %v346
  %v376 = vtanh.pop %v349
  %v377 = vtanh.pop %v352
  %v378 = vtanh.pop %v355
  %v379 = vtanh.pop %v358
  %v380 = vtanh.pop %v361
  %v381 = vtanh.pop %v364
  %s382 = scalar_lea.vmem %s2, 256
  %v383 = vld [vmem:[%s382] sm:$0xff]
  %v384 = vld [vmem:[%s382 + $0x8] sm:$0xff]
  %v385 = vld [vmem:[%s382 + $0x10] sm:$0xff]
  %v386 = vld [vmem:[%s382 + $0x18] sm:$0xff]
  %v387 = vld [vmem:[%s382 + $0x20] sm:$0xff]
  %v388 = vld [vmem:[%s382 + $0x28] sm:$0xff]
  %v389 = vld [vmem:[%s382 + $0x30] sm:$0xff]
  %v390 = vld [vmem:[%s382 + $0x38] sm:$0xff]
  %v391 = vld [vmem:[%s382 + $0x40] sm:$0xff]
  %v392 = vld [vmem:[%s382 + $0x48] sm:$0xff]
  %v393 = vld [vmem:[%s382 + $0x50] sm:$0xff]
  %v394 = vld [vmem:[%s382 + $0x58] sm:$0xff]
  %v395 = vld [vmem:[%s382 + $0x60] sm:$0xff]
  %v396 = vld [vmem:[%s382 + $0x68] sm:$0xff]
  %v397 = vld [vmem:[%s382 + $0x70] sm:$0xff]
  %v398 = vld [vmem:[%s382 + $0x78] sm:$0xff]
  %s399 = scalar_lea.vmem %s3, 3
  %v400 = vld [vmem:[%s399] sm:$0x1]
  %v402 = vperm.slane %v400, 0
  %404 = vmatpush.msra.mxu0 %v398
  %405 = vmatpush.msra.mxu0 %v397
  %406 = vmatpush.msra.mxu0 %v396
  %407 = vmatpush.msra.mxu0 %v395
  %408 = vmatpush.msra.mxu0 %v394
  %409 = vmatpush.msra.mxu0 %v393
  %410 = vmatpush.msra.mxu0 %v392
  %411 = vmatpush.msra.mxu0 %v391
  %412 = vmatpush.msra.mxu0 %v390
  %413 = vmatpush.msra.mxu0 %v389
  %414 = vmatpush.msra.mxu0 %v388
  %415 = vmatpush.msra.mxu0 %v387
  %416 = vmatpush.msra.mxu0 %v386
  %417 = vmatpush.msra.mxu0 %v385
  %418 = vmatpush.msra.mxu0 %v384
  %419 = vmatpush.msra.mxu0 %v383
  %420 = vmatmul.f32.gmra.mxu0 %v366
  %v421 = vpop.f32.mrf.mxu0
  %v422 = vadd.f32 %v402, %v421
  %423 = vmatmul.f32.gmra.mxu0 %v367
  %v424 = vpop.f32.mrf.mxu0
  %v425 = vadd.f32 %v402, %v424
  %426 = vmatmul.f32.gmra.mxu0 %v368
  %v427 = vpop.f32.mrf.mxu0
  %v428 = vadd.f32 %v402, %v427
  %429 = vmatmul.f32.gmra.mxu0 %v369
  %v430 = vpop.f32.mrf.mxu0
  %v431 = vadd.f32 %v402, %v430
  %432 = vmatmul.f32.gmra.mxu0 %v370
  %v433 = vpop.f32.mrf.mxu0
  %v434 = vadd.f32 %v402, %v433
  %435 = vmatmul.f32.gmra.mxu0 %v371
  %v436 = vpop.f32.mrf.mxu0
  %v437 = vadd.f32 %v402, %v436
  %438 = vmatmul.f32.gmra.mxu0 %v372
  %v439 = vpop.f32.mrf.mxu0
  %v440 = vadd.f32 %v402, %v439
  %441 = vmatmul.f32.gmra.mxu0 %v373
  %v442 = vpop.f32.mrf.mxu0
  %v443 = vadd.f32 %v402, %v442
  %444 = vmatmul.f32.gmra.mxu0 %v374
  %v445 = vpop.f32.mrf.mxu0
  %v446 = vadd.f32 %v402, %v445
  %447 = vmatmul.f32.gmra.mxu0 %v375
  %v448 = vpop.f32.mrf.mxu0
  %v449 = vadd.f32 %v402, %v448
  %450 = vmatmul.f32.gmra.mxu0 %v376
  %v451 = vpop.f32.mrf.mxu0
  %v452 = vadd.f32 %v402, %v451
  %453 = vmatmul.f32.gmra.mxu0 %v377
  %v454 = vpop.f32.mrf.mxu0
  %v455 = vadd.f32 %v402, %v454
  %456 = vmatmul.f32.gmra.mxu0 %v378
  %v457 = vpop.f32.mrf.mxu0
  %v458 = vadd.f32 %v402, %v457
  %459 = vmatmul.f32.gmra.mxu0 %v379
  %v460 = vpop.f32.mrf.mxu0
  %v461 = vadd.f32 %v402, %v460
  %462 = vmatmul.f32.gmra.mxu0 %v380
  %v463 = vpop.f32.mrf.mxu0
  %v464 = vadd.f32 %v402, %v463
  %465 = vmatmul.f32.gmra.mxu0 %v381
  %v466 = vpop.f32.mrf.mxu0
  %v467 = vadd.f32 %v402, %v466
  %468 = vdwg.mxu0
  %v469 = vtanh.pop %v422
  %v470 = vtanh.pop %v425
  %v471 = vtanh.pop %v428
  %v472 = vtanh.pop %v431
  %v473 = vtanh.pop %v434
  %v474 = vtanh.pop %v437
  %v475 = vtanh.pop %v440
  %v476 = vtanh.pop %v443
  %v477 = vtanh.pop %v446
  %v478 = vtanh.pop %v449
  %v479 = vtanh.pop %v452
  %v480 = vtanh.pop %v455
  %v481 = vtanh.pop %v458
  %v482 = vtanh.pop %v461
  %v483 = vtanh.pop %v464
  %v484 = vtanh.pop %v467
  %s485 = scalar_lea.vmem %s2, 384
  %v486 = vld [vmem:[%s485] sm:$0xff]
  %v487 = vld [vmem:[%s485 + $0x8] sm:$0xff]
  %v488 = vld [vmem:[%s485 + $0x10] sm:$0xff]
  %v489 = vld [vmem:[%s485 + $0x18] sm:$0xff]
  %v490 = vld [vmem:[%s485 + $0x20] sm:$0xff]
  %v491 = vld [vmem:[%s485 + $0x28] sm:$0xff]
  %v492 = vld [vmem:[%s485 + $0x30] sm:$0xff]
  %v493 = vld [vmem:[%s485 + $0x38] sm:$0xff]
  %v494 = vld [vmem:[%s485 + $0x40] sm:$0xff]
  %v495 = vld [vmem:[%s485 + $0x48] sm:$0xff]
  %v496 = vld [vmem:[%s485 + $0x50] sm:$0xff]
  %v497 = vld [vmem:[%s485 + $0x58] sm:$0xff]
  %v498 = vld [vmem:[%s485 + $0x60] sm:$0xff]
  %v499 = vld [vmem:[%s485 + $0x68] sm:$0xff]
  %v500 = vld [vmem:[%s485 + $0x70] sm:$0xff]
  %v501 = vld [vmem:[%s485 + $0x78] sm:$0xff]
  %s502 = scalar_lea.vmem %s3, 4
  %v503 = vld [vmem:[%s502] sm:$0x1]
  %v505 = vperm.slane %v503, 0
  %507 = vmatpush.msra.mxu0 %v501
  %508 = vmatpush.msra.mxu0 %v500
  %509 = vmatpush.msra.mxu0 %v499
  %510 = vmatpush.msra.mxu0 %v498
  %511 = vmatpush.msra.mxu0 %v497
  %512 = vmatpush.msra.mxu0 %v496
  %513 = vmatpush.msra.mxu0 %v495
  %514 = vmatpush.msra.mxu0 %v494
  %515 = vmatpush.msra.mxu0 %v493
  %516 = vmatpush.msra.mxu0 %v492
  %517 = vmatpush.msra.mxu0 %v491
  %518 = vmatpush.msra.mxu0 %v490
  %519 = vmatpush.msra.mxu0 %v489
  %520 = vmatpush.msra.mxu0 %v488
  %521 = vmatpush.msra.mxu0 %v487
  %522 = vmatpush.msra.mxu0 %v486
  %523 = vmatmul.f32.gmra.mxu0 %v469
  %v524 = vpop.f32.mrf.mxu0
  %v525 = vadd.f32 %v505, %v524
  %526 = vmatmul.f32.gmra.mxu0 %v470
  %v527 = vpop.f32.mrf.mxu0
  %v528 = vadd.f32 %v505, %v527
  %529 = vmatmul.f32.gmra.mxu0 %v471
  %v530 = vpop.f32.mrf.mxu0
  %v531 = vadd.f32 %v505, %v530
  %532 = vmatmul.f32.gmra.mxu0 %v472
  %v533 = vpop.f32.mrf.mxu0
  %v534 = vadd.f32 %v505, %v533
  %535 = vmatmul.f32.gmra.mxu0 %v473
  %v536 = vpop.f32.mrf.mxu0
  %v537 = vadd.f32 %v505, %v536
  %538 = vmatmul.f32.gmra.mxu0 %v474
  %v539 = vpop.f32.mrf.mxu0
  %v540 = vadd.f32 %v505, %v539
  %541 = vmatmul.f32.gmra.mxu0 %v475
  %v542 = vpop.f32.mrf.mxu0
  %v543 = vadd.f32 %v505, %v542
  %544 = vmatmul.f32.gmra.mxu0 %v476
  %v545 = vpop.f32.mrf.mxu0
  %v546 = vadd.f32 %v505, %v545
  %547 = vmatmul.f32.gmra.mxu0 %v477
  %v548 = vpop.f32.mrf.mxu0
  %v549 = vadd.f32 %v505, %v548
  %550 = vmatmul.f32.gmra.mxu0 %v478
  %v551 = vpop.f32.mrf.mxu0
  %v552 = vadd.f32 %v505, %v551
  %553 = vmatmul.f32.gmra.mxu0 %v479
  %v554 = vpop.f32.mrf.mxu0
  %v555 = vadd.f32 %v505, %v554
  %556 = vmatmul.f32.gmra.mxu0 %v480
  %v557 = vpop.f32.mrf.mxu0
  %v558 = vadd.f32 %v505, %v557
  %559 = vmatmul.f32.gmra.mxu0 %v481
  %v560 = vpop.f32.mrf.mxu0
  %v561 = vadd.f32 %v505, %v560
  %562 = vmatmul.f32.gmra.mxu0 %v482
  %v563 = vpop.f32.mrf.mxu0
  %v564 = vadd.f32 %v505, %v563
  %565 = vmatmul.f32.gmra.mxu0 %v483
  %v566 = vpop.f32.mrf.mxu0
  %v567 = vadd.f32 %v505, %v566
  %568 = vmatmul.f32.gmra.mxu0 %v484
  %v569 = vpop.f32.mrf.mxu0
  %v570 = vadd.f32 %v505, %v569
  %571 = vdwg.mxu0
  %v572 = vtanh.pop %v525
  %v573 = vtanh.pop %v528
  %v574 = vtanh.pop %v531
  %v575 = vtanh.pop %v534
  %v576 = vtanh.pop %v537
  %v577 = vtanh.pop %v540
  %v578 = vtanh.pop %v543
  %v579 = vtanh.pop %v546
  %v580 = vtanh.pop %v549
  %v581 = vtanh.pop %v552
  %v582 = vtanh.pop %v555
  %v583 = vtanh.pop %v558
  %v584 = vtanh.pop %v561
  %v585 = vtanh.pop %v564
  %v586 = vtanh.pop %v567
  %v587 = vtanh.pop %v570
  %s588 = scalar_lea.vmem %s2, 512
  %v589 = vld [vmem:[%s588] sm:$0xff]
  %v590 = vld [vmem:[%s588 + $0x8] sm:$0xff]
  %v591 = vld [vmem:[%s588 + $0x10] sm:$0xff]
  %v592 = vld [vmem:[%s588 + $0x18] sm:$0xff]
  %v593 = vld [vmem:[%s588 + $0x20] sm:$0xff]
  %v594 = vld [vmem:[%s588 + $0x28] sm:$0xff]
  %v595 = vld [vmem:[%s588 + $0x30] sm:$0xff]
  %v596 = vld [vmem:[%s588 + $0x38] sm:$0xff]
  %v597 = vld [vmem:[%s588 + $0x40] sm:$0xff]
  %v598 = vld [vmem:[%s588 + $0x48] sm:$0xff]
  %v599 = vld [vmem:[%s588 + $0x50] sm:$0xff]
  %v600 = vld [vmem:[%s588 + $0x58] sm:$0xff]
  %v601 = vld [vmem:[%s588 + $0x60] sm:$0xff]
  %v602 = vld [vmem:[%s588 + $0x68] sm:$0xff]
  %v603 = vld [vmem:[%s588 + $0x70] sm:$0xff]
  %v604 = vld [vmem:[%s588 + $0x78] sm:$0xff]
  %s605 = scalar_lea.vmem %s3, 5
  %v606 = vld [vmem:[%s605] sm:$0x1]
  %v608 = vperm.slane %v606, 0
  %610 = vmatpush.msra.mxu0 %v604
  %611 = vmatpush.msra.mxu0 %v603
  %612 = vmatpush.msra.mxu0 %v602
  %613 = vmatpush.msra.mxu0 %v601
  %614 = vmatpush.msra.mxu0 %v600
  %615 = vmatpush.msra.mxu0 %v599
  %616 = vmatpush.msra.mxu0 %v598
  %617 = vmatpush.msra.mxu0 %v597
  %618 = vmatpush.msra.mxu0 %v596
  %619 = vmatpush.msra.mxu0 %v595
  %620 = vmatpush.msra.mxu0 %v594
  %621 = vmatpush.msra.mxu0 %v593
  %622 = vmatpush.msra.mxu0 %v592
  %623 = vmatpush.msra.mxu0 %v591
  %624 = vmatpush.msra.mxu0 %v590
  %625 = vmatpush.msra.mxu0 %v589
  %626 = vmatmul.f32.gmra.mxu0 %v572
  %v627 = vpop.f32.mrf.mxu0
  %v628 = vadd.f32 %v608, %v627
  %629 = vmatmul.f32.gmra.mxu0 %v573
  %v630 = vpop.f32.mrf.mxu0
  %v631 = vadd.f32 %v608, %v630
  %632 = vmatmul.f32.gmra.mxu0 %v574
  %v633 = vpop.f32.mrf.mxu0
  %v634 = vadd.f32 %v608, %v633
  %635 = vmatmul.f32.gmra.mxu0 %v575
  %v636 = vpop.f32.mrf.mxu0
  %v637 = vadd.f32 %v608, %v636
  %638 = vmatmul.f32.gmra.mxu0 %v576
  %v639 = vpop.f32.mrf.mxu0
  %v640 = vadd.f32 %v608, %v639
  %641 = vmatmul.f32.gmra.mxu0 %v577
  %v642 = vpop.f32.mrf.mxu0
  %v643 = vadd.f32 %v608, %v642
  %644 = vmatmul.f32.gmra.mxu0 %v578
  %v645 = vpop.f32.mrf.mxu0
  %v646 = vadd.f32 %v608, %v645
  %647 = vmatmul.f32.gmra.mxu0 %v579
  %v648 = vpop.f32.mrf.mxu0
  %v649 = vadd.f32 %v608, %v648
  %650 = vmatmul.f32.gmra.mxu0 %v580
  %v651 = vpop.f32.mrf.mxu0
  %v652 = vadd.f32 %v608, %v651
  %653 = vmatmul.f32.gmra.mxu0 %v581
  %v654 = vpop.f32.mrf.mxu0
  %v655 = vadd.f32 %v608, %v654
  %656 = vmatmul.f32.gmra.mxu0 %v582
  %v657 = vpop.f32.mrf.mxu0
  %v658 = vadd.f32 %v608, %v657
  %659 = vmatmul.f32.gmra.mxu0 %v583
  %v660 = vpop.f32.mrf.mxu0
  %v661 = vadd.f32 %v608, %v660
  %662 = vmatmul.f32.gmra.mxu0 %v584
  %v663 = vpop.f32.mrf.mxu0
  %v664 = vadd.f32 %v608, %v663
  %665 = vmatmul.f32.gmra.mxu0 %v585
  %v666 = vpop.f32.mrf.mxu0
  %v667 = vadd.f32 %v608, %v666
  %668 = vmatmul.f32.gmra.mxu0 %v586
  %v669 = vpop.f32.mrf.mxu0
  %v670 = vadd.f32 %v608, %v669
  %671 = vmatmul.f32.gmra.mxu0 %v587
  %v672 = vpop.f32.mrf.mxu0
  %v673 = vadd.f32 %v608, %v672
  %674 = vdwg.mxu0
  %v675 = vtanh.pop %v628
  %v676 = vtanh.pop %v631
  %v677 = vtanh.pop %v634
  %v678 = vtanh.pop %v637
  %v679 = vtanh.pop %v640
  %v680 = vtanh.pop %v643
  %v681 = vtanh.pop %v646
  %v682 = vtanh.pop %v649
  %v683 = vtanh.pop %v652
  %v684 = vtanh.pop %v655
  %v685 = vtanh.pop %v658
  %v686 = vtanh.pop %v661
  %v687 = vtanh.pop %v664
  %v688 = vtanh.pop %v667
  %v689 = vtanh.pop %v670
  %v690 = vtanh.pop %v673
  %v691 = vld [vmem:[%s4] sm:$0xff]
  %v692 = vld [vmem:[%s4 + $0x8] sm:$0xff]
  %v693 = vld [vmem:[%s4 + $0x10] sm:$0xff]
  %v694 = vld [vmem:[%s4 + $0x18] sm:$0xff]
  %v695 = vld [vmem:[%s4 + $0x20] sm:$0xff]
  %v696 = vld [vmem:[%s4 + $0x28] sm:$0xff]
  %v697 = vld [vmem:[%s4 + $0x30] sm:$0xff]
  %v698 = vld [vmem:[%s4 + $0x38] sm:$0xff]
  %v699 = vld [vmem:[%s4 + $0x40] sm:$0xff]
  %v700 = vld [vmem:[%s4 + $0x48] sm:$0xff]
  %v701 = vld [vmem:[%s4 + $0x50] sm:$0xff]
  %v702 = vld [vmem:[%s4 + $0x58] sm:$0xff]
  %v703 = vld [vmem:[%s4 + $0x60] sm:$0xff]
  %v704 = vld [vmem:[%s4 + $0x68] sm:$0xff]
  %v705 = vld [vmem:[%s4 + $0x70] sm:$0xff]
  %v706 = vld [vmem:[%s4 + $0x78] sm:$0xff]
  %v707 = vld [vmem:[%s5] sm:$0x1]
  %v709 = vperm.slane %v707, 0
  %711 = vmatpush.msra.mxu0 %v706
  %712 = vmatpush.msra.mxu0 %v705
  %713 = vmatpush.msra.mxu0 %v704
  %714 = vmatpush.msra.mxu0 %v703
  %715 = vmatpush.msra.mxu0 %v702
  %716 = vmatpush.msra.mxu0 %v701
  %717 = vmatpush.msra.mxu0 %v700
  %718 = vmatpush.msra.mxu0 %v699
  %719 = vmatpush.msra.mxu0 %v698
  %720 = vmatpush.msra.mxu0 %v697
  %721 = vmatpush.msra.mxu0 %v696
  %722 = vmatpush.msra.mxu0 %v695
  %723 = vmatpush.msra.mxu0 %v694
  %724 = vmatpush.msra.mxu0 %v693
  %725 = vmatpush.msra.mxu0 %v692
  %726 = vmatpush.msra.mxu0 %v691
  %727 = vmatmul.f32.gmra.mxu0 %v675
  %v728 = vpop.f32.mrf.mxu0
  %v729 = vadd.f32 %v709, %v728
  %730 = vmatmul.f32.gmra.mxu0 %v676
  %v731 = vpop.f32.mrf.mxu0
  %v732 = vadd.f32 %v709, %v731
  %733 = vmatmul.f32.gmra.mxu0 %v677
  %v734 = vpop.f32.mrf.mxu0
  %v735 = vadd.f32 %v709, %v734
  %736 = vmatmul.f32.gmra.mxu0 %v678
  %v737 = vpop.f32.mrf.mxu0
  %v738 = vadd.f32 %v709, %v737
  %739 = vmatmul.f32.gmra.mxu0 %v679
  %v740 = vpop.f32.mrf.mxu0
  %v741 = vadd.f32 %v709, %v740
  %742 = vmatmul.f32.gmra.mxu0 %v680
  %v743 = vpop.f32.mrf.mxu0
  %v744 = vadd.f32 %v709, %v743
  %745 = vmatmul.f32.gmra.mxu0 %v681
  %v746 = vpop.f32.mrf.mxu0
  %v747 = vadd.f32 %v709, %v746
  %748 = vmatmul.f32.gmra.mxu0 %v682
  %v749 = vpop.f32.mrf.mxu0
  %v750 = vadd.f32 %v709, %v749
  %751 = vmatmul.f32.gmra.mxu0 %v683
  %v752 = vpop.f32.mrf.mxu0
  %v753 = vadd.f32 %v709, %v752
  %754 = vmatmul.f32.gmra.mxu0 %v684
  %v755 = vpop.f32.mrf.mxu0
  %v756 = vadd.f32 %v709, %v755
  %757 = vmatmul.f32.gmra.mxu0 %v685
  %v758 = vpop.f32.mrf.mxu0
  %v759 = vadd.f32 %v709, %v758
  %760 = vmatmul.f32.gmra.mxu0 %v686
  %v761 = vpop.f32.mrf.mxu0
  %v762 = vadd.f32 %v709, %v761
  %763 = vmatmul.f32.gmra.mxu0 %v687
  %v764 = vpop.f32.mrf.mxu0
  %v765 = vadd.f32 %v709, %v764
  %766 = vmatmul.f32.gmra.mxu0 %v688
  %v767 = vpop.f32.mrf.mxu0
  %v768 = vadd.f32 %v709, %v767
  %769 = vmatmul.f32.gmra.mxu0 %v689
  %v770 = vpop.f32.mrf.mxu0
  %v771 = vadd.f32 %v709, %v770
  %772 = vmatmul.f32.gmra.mxu0 %v690
  %v773 = vpop.f32.mrf.mxu0
  %v774 = vadd.f32 %v709, %v773
  %775 = vdwg.mxu0
  %vm776 = vcmask 130048
  %777 = vst.msk [vmem:[%s6] sm:$0xff] %vm776, %v729
  %778 = vst.msk [vmem:[%s6 + $0x8] sm:$0xff] %vm776, %v732
  %779 = vst.msk [vmem:[%s6 + $0x10] sm:$0xff] %vm776, %v735
  %780 = vst.msk [vmem:[%s6 + $0x18] sm:$0xff] %vm776, %v738
  %781 = vst.msk [vmem:[%s6 + $0x20] sm:$0xff] %vm776, %v741
  %782 = vst.msk [vmem:[%s6 + $0x28] sm:$0xff] %vm776, %v744
  %783 = vst.msk [vmem:[%s6 + $0x30] sm:$0xff] %vm776, %v747
  %784 = vst.msk [vmem:[%s6 + $0x38] sm:$0xff] %vm776, %v750
  %785 = vst.msk [vmem:[%s6 + $0x40] sm:$0xff] %vm776, %v753
  %786 = vst.msk [vmem:[%s6 + $0x48] sm:$0xff] %vm776, %v756
  %787 = vst.msk [vmem:[%s6 + $0x50] sm:$0xff] %vm776, %v759
  %788 = vst.msk [vmem:[%s6 + $0x58] sm:$0xff] %vm776, %v762
  %789 = vst.msk [vmem:[%s6 + $0x60] sm:$0xff] %vm776, %v765
  %790 = vst.msk [vmem:[%s6 + $0x68] sm:$0xff] %vm776, %v768
  %791 = vst.msk [vmem:[%s6 + $0x70] sm:$0xff] %vm776, %v771
  %792 = vst.msk [vmem:[%s6 + $0x78] sm:$0xff] %vm776, %v774
  // Predicated region
  $region26: #{pinn_forward.1} parent=0 // pred_check
    _
  $region27: #{pinn_forward.1} parent=0 // pred_check_branch
    %794 = sbr.rel (0) target = $region29
  $region28: #{pinn_forward.1} parent=0 // pred_region
    _
  $region29: #{pinn_forward.1} parent=0 // pred_fallthru
    _
  // Predicated region
  $region30: #{pinn_forward.1} parent=0 // pred_check
    _
  $region31: #{pinn_forward.1} parent=0 // pred_check_branch
    %796 = sbr.rel (0) target = $region33
  $region32: #{pinn_forward.1} parent=0 // pred_region
    _
  $region33: #{pinn_forward.1} parent=0 // pred_fallthru
    _

</llo_original>
